<compile_context>
chip_gen: v5e
topology: v5e:2x2
jax: 0.10.0
libtpu: 0.0.40
codegen_flags: <defaults>
</compile_context>

<pallas_src>
import jax
import jax.numpy as jnp
from jax import lax
from jax.experimental import pallas as pl
from jax.experimental.pallas import tpu as pltpu

_LANE = 128
_SUBLANE = 8


def _round_up(x: int, m: int) -> int:
    return (x + m - 1) // m * m


def _features_linear_kernel(idx_ref, off_ref, emb_ref, bias_ref, out_ref):
    """One batch tile: multi-hot(x + offsets) @ E_padded + bias_padded."""
    # (TILE_B, F) int32 indices, shifted by per-field offsets (broadcast add).
    idx = idx_ref[...] + off_ref[...]
    tile_b, num_fields = idx.shape
    v_pad = emb_ref.shape[0]

    # Build the multi-hot encoding on the VPU: one 128-lane compare per field.
    # Static Python unroll (num_fields is small); keeps the live working set
    # at one (tile_b, v_pad) f32 accumulator instead of a (tile_b, F, v_pad)
    # temporary.
    col = lax.broadcasted_iota(jnp.int32, (tile_b, v_pad), 1)
    multi_hot = (idx[:, 0:1] == col).astype(jnp.float32)
    for f in range(1, num_fields):
        multi_hot = multi_hot + (idx[:, f:f + 1] == col).astype(jnp.float32)

    # Embedding lookup + field-sum as a single MXU matmul (f32 accumulation),
    # then broadcast-add the bias row.
    y = jnp.dot(multi_hot, emb_ref[...], preferred_element_type=jnp.float32)
    out_ref[...] = (y + bias_ref[...]).astype(out_ref.dtype)


def init_features_linear(key, field_dims, output_dim=1, dtype=jnp.float32):
    """Parameters matching torch's FeaturesLinear, pre-padded lane-dense."""
    vocab = int(sum(field_dims))
    k_emb, _ = jax.random.split(key)
    emb = jax.random.normal(k_emb, (vocab, output_dim), dtype) * 0.01
    bias = jnp.zeros((output_dim,), dtype)

    offs = [0]
    for d in field_dims[:-1]:
        offs.append(offs[-1] + int(d))
    offsets = jnp.asarray(offs, dtype=jnp.int32)

    # Zero-pad vocab and output dims to multiples of 128 lanes (padding rows
    # are never indexed since valid offset indices < vocab; padded output
    # columns are zero and get sliced away).
    v_pad = _round_up(vocab, _LANE)
    d_pad = _round_up(output_dim, _LANE)
    emb_p = jnp.zeros((v_pad, d_pad), dtype).at[:vocab, :output_dim].set(emb)
    bias_p = jnp.zeros((1, d_pad), dtype).at[0, :output_dim].set(bias)
    return {
        "emb_raw": emb, "bias_raw": bias,       # for reference checks
        "emb_padded": emb_p, "bias_padded": bias_p,
        "offsets": offsets, "output_dim": output_dim,
    }


def features_linear_forward(x, params, *, tile_b=512):
    """x: (B, num_fields) integer field indices -> (B, output_dim) float."""
    emb_p = params["emb_padded"]
    bias_p = params["bias_padded"]
    offsets = params["offsets"]
    output_dim = params["output_dim"]

    B, F = x.shape
    v_pad, d_pad = emb_p.shape
    x = x.astype(jnp.int32)
    off = offsets.reshape(1, F).astype(jnp.int32)

    # Batch tiling: big tiles for DMA/compute overlap, clamped for small B.
    tile_b = min(tile_b, _round_up(B, _SUBLANE))
    b_pad = _round_up(B, tile_b)
    if b_pad != B:
        # Padded rows use index 0 (a valid row) and are sliced off afterwards.
        x = jnp.zeros((b_pad, F), jnp.int32).at[:B].set(x)

    grid = (b_pad // tile_b,)
    out = pl.pallas_call(
        _features_linear_kernel,
        out_shape=jax.ShapeDtypeStruct((b_pad, d_pad), emb_p.dtype),
        grid_spec=pltpu.PrefetchScalarGridSpec(
            num_scalar_prefetch=0,
            grid=grid,
            in_specs=[
                pl.BlockSpec((tile_b, F), lambda i: (i, 0)),     # indices tile
                pl.BlockSpec((1, F), lambda i: (0, 0)),          # offsets (resident)
                pl.BlockSpec((v_pad, d_pad), lambda i: (0, 0)),  # emb table (resident)
                pl.BlockSpec((1, d_pad), lambda i: (0, 0)),      # bias (resident)
            ],
            out_specs=pl.BlockSpec((tile_b, d_pad), lambda i: (i, 0)),
        ),
        compiler_params=pltpu.CompilerParams(
            dimension_semantics=("parallel",),  # shard batch tiles across TCs
        ),
        cost_estimate=pl.CostEstimate(
            flops=2 * b_pad * v_pad * d_pad + 2 * b_pad * F * v_pad,
            transcendentals=0,
            bytes_accessed=4 * (b_pad * F + v_pad * d_pad + b_pad * d_pad),
        ),
    )(x, off, emb_p, bias_p)

    # Slice away batch padding and the lane padding of the output dim.
    return out[:B, :output_dim]


if __name__ == "__main__":
    key = jax.random.PRNGKey(0)
    k_params, k_x = jax.random.split(key)

    field_dims = (3, 4, 5, 6)          # vocab = 18
    num_fields = len(field_dims)
    batch = 8
    output_dim = 1

    params = init_features_linear(k_params, field_dims, output_dim)

    # Per-field categorical indices in [0, field_dims[f]).
    x = jax.random.randint(
        k_x, (batch, num_fields), 0, jnp.asarray(field_dims, jnp.int32),
        dtype=jnp.int32)

    out = features_linear_forward(x, params)
    out = jax.block_until_ready(out)

    assert out.shape == (batch, output_dim), out.shape
    assert out.dtype == jnp.float32, out.dtype

    # Pure-JAX reference: gather + field-sum + bias.
    idx = x + params["offsets"][None, :]
    ref = params["emb_raw"][idx].sum(axis=1) + params["bias_raw"]
    assert jnp.allclose(out, ref, atol=1e-5, rtol=1e-5), (out, ref)

    print("KERNEL_OK")
</pallas_src>

<mosaic_0001>
module attributes {stable_mosaic.version = 11 : i64} {
  func.func @_features_linear_kernel(%arg0: i32, %arg1: memref<8x4xi32, #tpu.memory_space<vmem>>, %arg2: memref<1x4xi32, #tpu.memory_space<vmem>>, %arg3: memref<128x128xf32, #tpu.memory_space<vmem>>, %arg4: memref<1x128xf32, #tpu.memory_space<vmem>>, %arg5: memref<8x128xf32, #tpu.memory_space<vmem>>) attributes {dimension_semantics = [#tpu.dimension_semantics<parallel>], iteration_bounds = array<i64: 1>, scalar_prefetch = 0 : i64, scratch_operands = 0 : i64, tpu.core_type = #tpu.core_type<tc>, window_params = [{transform_indices = @transform_0, window_bounds = array<i64: 8, 4>}, {pipeline_mode = #tpu.pipeline_mode<synchronous>, transform_indices = @transform_1, window_bounds = array<i64: 1, 4>}, {pipeline_mode = #tpu.pipeline_mode<synchronous>, transform_indices = @transform_2, window_bounds = array<i64: 128, 128>}, {pipeline_mode = #tpu.pipeline_mode<synchronous>, transform_indices = @transform_3, window_bounds = array<i64: 1, 128>}, {transform_indices = @transform_4, window_bounds = array<i64: 8, 128>}]} {
    %c0 = arith.constant 0 : index
    %c0_0 = arith.constant 0 : index
    %0 = vector.load %arg1[%c0, %c0_0] : memref<8x4xi32, #tpu.memory_space<vmem>>, vector<8x4xi32>
    %c0_1 = arith.constant 0 : index
    %c0_2 = arith.constant 0 : index
    %1 = vector.load %arg2[%c0_1, %c0_2] : memref<1x4xi32, #tpu.memory_space<vmem>>, vector<1x4xi32>
    %2 = vector.broadcast %1 : vector<1x4xi32> to vector<8x4xi32>
    %3 = arith.addi %0, %2 : vector<8x4xi32>
    %4 = tpu.iota {dimensions = array<i32: 1>} : vector<8x128xi32>
    %5 = vector.extract_strided_slice %3 {offsets = [0, 0], sizes = [8, 1], strides = [1, 1]} : vector<8x4xi32> to vector<8x1xi32>
    %6 = vector.broadcast %5 : vector<8x1xi32> to vector<8x128xi32>
    %7 = arith.cmpi eq, %6, %4 : vector<8x128xi32>
    %8 = arith.extui %7 : vector<8x128xi1> to vector<8x128xi32>
    %9 = arith.sitofp %8 : vector<8x128xi32> to vector<8x128xf32>
    %10 = vector.extract_strided_slice %3 {offsets = [0, 1], sizes = [8, 1], strides = [1, 1]} : vector<8x4xi32> to vector<8x1xi32>
    %11 = vector.broadcast %10 : vector<8x1xi32> to vector<8x128xi32>
    %12 = arith.cmpi eq, %11, %4 : vector<8x128xi32>
    %13 = arith.extui %12 : vector<8x128xi1> to vector<8x128xi32>
    %14 = arith.sitofp %13 : vector<8x128xi32> to vector<8x128xf32>
    %15 = arith.addf %9, %14 : vector<8x128xf32>
    %16 = vector.extract_strided_slice %3 {offsets = [0, 2], sizes = [8, 1], strides = [1, 1]} : vector<8x4xi32> to vector<8x1xi32>
    %17 = vector.broadcast %16 : vector<8x1xi32> to vector<8x128xi32>
    %18 = arith.cmpi eq, %17, %4 : vector<8x128xi32>
    %19 = arith.extui %18 : vector<8x128xi1> to vector<8x128xi32>
    %20 = arith.sitofp %19 : vector<8x128xi32> to vector<8x128xf32>
    %21 = arith.addf %15, %20 : vector<8x128xf32>
    %22 = vector.extract_strided_slice %3 {offsets = [0, 3], sizes = [8, 1], strides = [1, 1]} : vector<8x4xi32> to vector<8x1xi32>
    %23 = vector.broadcast %22 : vector<8x1xi32> to vector<8x128xi32>
    %24 = arith.cmpi eq, %23, %4 : vector<8x128xi32>
    %25 = arith.extui %24 : vector<8x128xi1> to vector<8x128xi32>
    %26 = arith.sitofp %25 : vector<8x128xi32> to vector<8x128xf32>
    %27 = arith.addf %21, %26 : vector<8x128xf32>
    %c0_3 = arith.constant 0 : index
    %c0_4 = arith.constant 0 : index
    %28 = vector.load %arg3[%c0_3, %c0_4] : memref<128x128xf32, #tpu.memory_space<vmem>>, vector<128x128xf32>
    %cst = arith.constant dense<0.000000e+00> : vector<8x128xf32>
    %29 = tpu.matmul %27, %28, %cst {dimension_numbers = #tpu.dot_dimension_numbers<[1], [0], [0], [1], [0, 0, 1, 1], [], []>} : vector<8x128xf32>, vector<128x128xf32>, vector<8x128xf32> -> vector<8x128xf32>
    %c0_5 = arith.constant 0 : index
    %c0_6 = arith.constant 0 : index
    %30 = vector.load %arg4[%c0_5, %c0_6] : memref<1x128xf32, #tpu.memory_space<vmem>>, vector<1x128xf32>
    %31 = vector.broadcast %30 : vector<1x128xf32> to vector<8x128xf32>
    %32 = arith.addf %29, %31 : vector<8x128xf32>
    %c0_7 = arith.constant 0 : index
    %c0_8 = arith.constant 0 : index
    %33 = vector.load %arg5[%c0_7, %c0_8] : memref<8x128xf32, #tpu.memory_space<vmem>>, vector<8x128xf32>
    tpu.vector_store %arg5[%c0_7, %c0_8], %32 {strides = array<i32>} : memref<8x128xf32, #tpu.memory_space<vmem>>, vector<8x128xf32>,
    return
  }
  func.func @transform_0(%arg0: i32) -> (i32, i32) {
    %c0_i32 = arith.constant 0 : i32
    %c0_i32_0 = arith.constant 0 : i32
    return %arg0, %c0_i32 : i32, i32
  }
  func.func @transform_1(%arg0: i32) -> (i32, i32) {
    %c0_i32 = arith.constant 0 : i32
    %c0_i32_0 = arith.constant 0 : i32
    %c0_i32_1 = arith.constant 0 : i32
    return %c0_i32, %c0_i32_0 : i32, i32
  }
  func.func @transform_2(%arg0: i32) -> (i32, i32) {
    %c0_i32 = arith.constant 0 : i32
    %c0_i32_0 = arith.constant 0 : i32
    %c0_i32_1 = arith.constant 0 : i32
    return %c0_i32, %c0_i32_0 : i32, i32
  }
  func.func @transform_3(%arg0: i32) -> (i32, i32) {
    %c0_i32 = arith.constant 0 : i32
    %c0_i32_0 = arith.constant 0 : i32
    %c0_i32_1 = arith.constant 0 : i32
    return %c0_i32, %c0_i32_0 : i32, i32
  }
  func.func @transform_4(%arg0: i32) -> (i32, i32) {
    %c0_i32 = arith.constant 0 : i32
    %c0_i32_0 = arith.constant 0 : i32
    return %arg0, %c0_i32 : i32, i32
  }
}

</mosaic_0001>

<llo_original>
// kernel: tpu_custom_call.1
$region0: #{tpu_custom_call.1}
  #allocation0 [shape = 'u32[]', space=smem, size = 0x4, offset = 0x4, fixed_abs, tag = 'smem constant byte address 0x4 - core index']
  #allocation1 [shape = 'u32[72,128]{1,0:T(1,128)}', space=vmem, size = 0x9000, scoped, tag = 'internal scratch']
  %s0 = inlined_call_operand.vmem [shape: s32[8,4], index: 0, kind: input, shape index: {}]
  %s1 = inlined_call_operand.vmem [shape: s32[1,4], index: 1, kind: input, shape index: {}]
  %s2 = inlined_call_operand.hbm [shape: f32[128,128], index: 2, kind: input, shape index: {}]
  %s3 = inlined_call_operand.vmem [shape: f32[1,128], index: 3, kind: input, shape index: {}]
  %s4 = inlined_call_operand.hbm [shape: f32[8,128], index: 4, kind: output, shape index: {}]
  %s5 = sld [smem:[#allocation0]]
  $region30: #{tpu_custom_call.1} parent=0
    _
  %s7 = ssub.s32 1, %s5
  %s8 = scalar_select 0, %s7, %s5
  $region1: #{tpu_custom_call.1} parent=0
    #allocation2 [shape = 'u8[65536]{0}', space=vmem, size = 0x10000, scoped, tag = 'input window, operand 2, single buffered']
    #allocation3 [shape = 's32[1]{0}', space=sflag, size = 0x4, scoped, tag = 'scoped memory for tpu_custom_call.1']
    #allocation4 [shape = 's32[1]{0}', space=sflag, size = 0x4, scoped, tag = 'scoped memory for tpu_custom_call.1']
    #allocation5 [shape = 'u8[4096]{0}', space=vmem, size = 0x1000, scoped, tag = 'output window, operand 0, single buffered']
    %9 = vsyncpa [#allocation3], 0
    %10 = vsyncpa [#allocation4], 0
    // Predicated region
    $region2: #{tpu_custom_call.1} parent=1 // pred_check
      _
    $region3: #{tpu_custom_call.1} parent=1 // pred_check_branch
      %12 = sbr.rel (0) target = $region5
    $region4: #{tpu_custom_call.1} parent=1 // pred_region
      _
    $region5: #{tpu_custom_call.1} parent=1 // pred_fallthru
      _
    // Predicated region
    $region6: #{tpu_custom_call.1} parent=1 // pred_check
      _
    $region7: #{tpu_custom_call.1} parent=1 // pred_check_branch
      %14 = sbr.rel (0) target = $region9
    $region8: #{tpu_custom_call.1} parent=1 // pred_region
      _
    $region9: #{tpu_custom_call.1} parent=1 // pred_fallthru
      _
    // Predicated region
    $region10: #{tpu_custom_call.1} parent=1 // pred_check
      _
    $region11: #{tpu_custom_call.1} parent=1 // pred_check_branch
      %16 = sbr.rel (0) target = $region13
    $region12: #{tpu_custom_call.1} parent=1 // pred_region
      %18 = vsyncadd [#allocation3], 0
      %s19 = sshll.u32 %s2, 4
      %s20 = int_to_ptr.hbm [resolvable:$true] %s19
      %s21 = sshll.u32 [#allocation2], 4
      %s22 = int_to_ptr.vmem [resolvable:$true] %s21
      %27 = dma.hbm_to_vmem [thread:$0]  %s20, 2048, %s22, [#allocation3], 128, 128, 8
    $region13: #{tpu_custom_call.1} parent=1 // pred_fallthru
      _
    // Predicated region
    $region14: #{tpu_custom_call.1} parent=1 // pred_check
      _
    $region15: #{tpu_custom_call.1} parent=1 // pred_check_branch
      %29 = sbr.rel (0) target = $region17
    $region16: #{tpu_custom_call.1} parent=1 // pred_region
      _
    $region17: #{tpu_custom_call.1} parent=1 // pred_fallthru
      _
    // Predicated region
    $region18: #{tpu_custom_call.1} parent=1 // pred_check
      _
    $region19: #{tpu_custom_call.1} parent=1 // pred_check_branch
      %31 = sbr.rel (0) target = $region21
    $region20: #{tpu_custom_call.1} parent=1 // pred_region
      %33 = dma.done [#allocation3], 2048
    $region21: #{tpu_custom_call.1} parent=1 // pred_fallthru
      _
    %v34 = vld [vmem:[%s0] sm:$0xff]
    %v35 = vld [vmem:[%s1] sm:$0x1]
    %v36 = vperm.slane %v35, 0
    %v37 = vadd.s32 %v34, %v36
    %v38 = vlaneseq
    %v39 = vand.u32 %v38, 127
    %40 = vset.pattern.permute.xlu0 0
    %41 = vperm.xlu0 %40, %v37
    %v42 = vpop.permute.xlu0 %41
    %vm43 = vcmp.eq.s32.totalorder %v42, %v39
    %v44 = vsel %vm43, 1, 0
    %v45 = vcvt.s32.f32 %v44
    %46 = vset.pattern.permute.xlu0 1
    %47 = vperm.xlu0 %46, %v37
    %v48 = vpop.permute.xlu0 %47
    %vm49 = vcmp.eq.s32.totalorder %v48, %v39
    %v50 = vsel %vm49, 1, 0
    %v51 = vcvt.s32.f32 %v50
    %v52 = vadd.f32 %v45, %v51
    %53 = vset.pattern.permute.xlu0 2
    %54 = vperm.xlu0 %53, %v37
    %v55 = vpop.permute.xlu0 %54
    %vm56 = vcmp.eq.s32.totalorder %v55, %v39
    %v57 = vsel %vm56, 1, 0
    %v58 = vcvt.s32.f32 %v57
    %v59 = vadd.f32 %v52, %v58
    %60 = vset.pattern.permute.xlu0 3
    %61 = vperm.xlu0 %60, %v37
    %v62 = vpop.permute.xlu0 %61
    %vm63 = vcmp.eq.s32.totalorder %v62, %v39
    %v64 = vsel %vm63, 1, 0
    %v65 = vcvt.s32.f32 %v64
    %v66 = vadd.f32 %v59, %v65
    %v67 = vld [vmem:[#allocation2] sm:$0xff]
    %v68 = vld [vmem:[#allocation2 + $0x8] sm:$0xff]
    %v69 = vld [vmem:[#allocation2 + $0x10] sm:$0xff]
    %v70 = vld [vmem:[#allocation2 + $0x18] sm:$0xff]
    %v71 = vld [vmem:[#allocation2 + $0x20] sm:$0xff]
    %v72 = vld [vmem:[#allocation2 + $0x28] sm:$0xff]
    %v73 = vld [vmem:[#allocation2 + $0x30] sm:$0xff]
    %v74 = vld [vmem:[#allocation2 + $0x38] sm:$0xff]
    %v75 = vld [vmem:[#allocation2 + $0x40] sm:$0xff]
    %v76 = vld [vmem:[#allocation2 + $0x48] sm:$0xff]
    %v77 = vld [vmem:[#allocation2 + $0x50] sm:$0xff]
    %v78 = vld [vmem:[#allocation2 + $0x58] sm:$0xff]
    %v79 = vld [vmem:[#allocation2 + $0x60] sm:$0xff]
    %v80 = vld [vmem:[#allocation2 + $0x68] sm:$0xff]
    %v81 = vld [vmem:[#allocation2 + $0x70] sm:$0xff]
    %v82 = vld [vmem:[#allocation2 + $0x78] sm:$0xff]
    %v83 = vld [vmem:[%s3] sm:$0x1]
    %v85 = vperm.slane %v83, 0
    %87 = vmatpush.msra.mxu0 %v82
    %88 = vmatpush.msra.mxu0 %v81
    %89 = vmatpush.msra.mxu0 %v80
    %90 = vmatpush.msra.mxu0 %v79
    %91 = vmatpush.msra.mxu0 %v78
    %92 = vmatpush.msra.mxu0 %v77
    %93 = vmatpush.msra.mxu0 %v76
    %94 = vmatpush.msra.mxu0 %v75
    %95 = vmatpush.msra.mxu0 %v74
    %96 = vmatpush.msra.mxu0 %v73
    %97 = vmatpush.msra.mxu0 %v72
    %98 = vmatpush.msra.mxu0 %v71
    %99 = vmatpush.msra.mxu0 %v70
    %100 = vmatpush.msra.mxu0 %v69
    %101 = vmatpush.msra.mxu0 %v68
    %102 = vmatpush.msra.mxu0 %v67
    %103 = vmatmul.f32.gmra.mxu0 %v66
    %v104 = vpop.f32.mrf.mxu0
    %v105 = vadd.f32 %v85, %v104
    %106 = vdwg.mxu0
    %107 = vst [vmem:[#allocation5] sm:$0xff] %v105
    // Predicated region
    $region22: #{tpu_custom_call.1} parent=1 // pred_check
      _
    $region23: #{tpu_custom_call.1} parent=1 // pred_check_branch
      %109 = sbr.rel (0) target = $region25
    $region24: #{tpu_custom_call.1} parent=1 // pred_region
      %111 = vsyncadd [#allocation4], 0
      %s113 = sshll.u32 [#allocation5], 4
      %s114 = int_to_ptr.vmem [resolvable:$true] %s113
      %s115 = sshll.u32 %s4, 4
      %s116 = int_to_ptr.hbm [resolvable:$true] %s115
      %118 = dma.vmem_to_hbm [thread:$0]  %s114, 128, %s116, [#allocation4]
    $region25: #{tpu_custom_call.1} parent=1 // pred_fallthru
      _
    // Predicated region
    $region26: #{tpu_custom_call.1} parent=1 // pred_check
      _
    $region27: #{tpu_custom_call.1} parent=1 // pred_check_branch
      %120 = sbr.rel (0) target = $region29
    $region28: #{tpu_custom_call.1} parent=1 // pred_region
      %122 = dma.done [#allocation4], 128
    $region29: #{tpu_custom_call.1} parent=1 // pred_fallthru
      _
    %123 = vsyncpa [#allocation3], 1
    %124 = vsyncpa [#allocation4], 1

</llo_original>
